<compile_context>
chip_gen: v7x
topology: tpu7x:2x2x1
jax: 0.10.0
libtpu: 0.0.40
codegen_flags: <defaults>
</compile_context>

<pallas_src>
import functools

import jax
import jax.numpy as jnp
from jax.experimental import pallas as pl
from jax.experimental.pallas import tpu as pltpu

EPS = 1e-6


# ---------------------------------------------------------------------------
# Stage A kernel: norm1 -> conv1 -> 3x3 depthwise -> SimpleGate (+ SCA pool)
# ---------------------------------------------------------------------------
def stage_a_kernel(x_ref, halo_ref, w1_ref, taps_ref, bias12_ref,
                   g_ref, pool_ref, *, Rb, W, HW):
    C = x_ref.shape[1]
    L = Rb * W
    dwc = w1_ref.shape[0]
    half = dwc // 2
    r = pl.program_id(1)

    w1 = w1_ref[...]                          # (2C, C) bf16
    bias12 = bias12_ref[...]                  # (2C, 2) f32: [b1 | b2]
    b1 = bias12[:, 0:1]
    b2 = bias12[:, 1:2]

    def norm1_conv1(v):                       # (C, n) f32 -> (2C, n) f32
        u = jnp.mean(v, axis=0, keepdims=True)
        vc = v - u
        var = jnp.mean(vc * vc, axis=0, keepdims=True)
        vn = (vc * jax.lax.rsqrt(var + EPS)).astype(jnp.bfloat16)
        return jnp.dot(w1, vn, preferred_element_type=jnp.float32) + b1

    inp = x_ref[0]                            # (C, L) f32
    t = norm1_conv1(inp)                      # (2C, L) f32

    # halo rows (row above / below the block); zero them at the image border
    h = halo_ref[0, 0]                        # (2C, W): rows [:C]=above, [C:]=below
    top_valid = (r > 0).astype(jnp.float32)
    bot_valid = (r < pl.num_programs(1) - 1).astype(jnp.float32)
    hT = norm1_conv1(h[:C]) * top_valid       # (2C, W)
    hB = norm1_conv1(h[C:]) * bot_valid

    # --- 3x3 depthwise conv, padding=1, via lane rolls + column-zeroed sources ---
    lane = jax.lax.broadcasted_iota(jnp.int32, (1, L), 1)
    col = lane % W
    not_col0 = col != 0
    not_colw = col != (W - 1)

    def lz(a):                                # zero column 0 of every row
        return jnp.where(not_col0, a, 0.0)

    def rz(a):                                # zero column W-1 of every row
        return jnp.where(not_colw, a, 0.0)

    taps = taps_ref[...]                      # (2C, 9), tap k = ky*3 + kx

    def tap(k):
        return taps[:, k:k + 1]               # (2C, 1)

    # vertical-neighbour sources (halo rows fill the block boundary rows)
    x_up = jnp.concatenate([hT, t[:, :L - W]], axis=1)   # value of row - 1
    x_dn = jnp.concatenate([t[:, W:], hB], axis=1)       # value of row + 1

    acc = t * tap(4)                                                # ( 0,  0)
    acc = acc + pltpu.roll(rz(t),    shift=1,     axis=1) * tap(3)  # ( 0, -1)
    acc = acc + pltpu.roll(lz(t),    shift=L - 1, axis=1) * tap(5)  # ( 0, +1)
    acc = acc + x_up * tap(1)                                       # (-1,  0)
    acc = acc + pltpu.roll(rz(x_up), shift=1,     axis=1) * tap(0)  # (-1, -1)
    acc = acc + pltpu.roll(lz(x_up), shift=L - 1, axis=1) * tap(2)  # (-1, +1)
    acc = acc + x_dn * tap(7)                                       # (+1,  0)
    acc = acc + pltpu.roll(rz(x_dn), shift=1,     axis=1) * tap(6)  # (+1, -1)
    acc = acc + pltpu.roll(lz(x_dn), shift=L - 1, axis=1) * tap(8)  # (+1, +1)
    t = acc + b2                                                    # (2C, L)

    # SimpleGate (sublane-aligned channel halves)
    g = t[:half] * t[half:]                   # (C, L) f32
    g_ref[0] = g.astype(g_ref.dtype)          # stored bf16 (conv3 consumes bf16 anyway)

    # SCA global average pool, accumulated across row blocks (1/HW folded in)
    psum = jnp.sum(g, axis=1, keepdims=True) * (1.0 / HW)   # (C, 1)

    @pl.when(r == 0)
    def _():
        pool_ref[0] = jnp.zeros_like(psum)

    pool_ref[0] = pool_ref[0] + psum


# ---------------------------------------------------------------------------
# Stage C kernel: SCA + conv3 + residual + norm2 + FFN + residual
# ---------------------------------------------------------------------------
def stage_c_kernel(x_ref, g_ref, pool_ref, wscat_ref, bsca_ref, w3_ref,
                   w4_ref, b4_ref, w5_ref, biasc_ref, out_ref):
    ffn = w4_ref.shape[0]
    half = ffn // 2

    inp = x_ref[0]                            # (C, L) f32
    g = g_ref[0]                              # (C, L) bf16
    pooled = pool_ref[0]                      # (C, 1) f32

    biasc = biasc_ref[...]                    # (C, 2): [beta*b3 | gamma*b5]
    b3 = biasc[:, 0:1]
    b5 = biasc[:, 1:2]

    # SCA channel scale folded into conv3's weight (beta folded at prep time)
    sca = jnp.sum(wscat_ref[...] * pooled, axis=0, keepdims=True) + bsca_ref[...]
    w3_eff = (w3_ref[...] * sca).astype(jnp.bfloat16)        # (C, C)
    xb = jnp.dot(w3_eff, g, preferred_element_type=jnp.float32) + b3
    y = inp + xb                              # residual 1 (beta folded)

    # norm2 (affine folded into conv4) + FFN (single merged matmul + aligned gate)
    u = jnp.mean(y, axis=0, keepdims=True)
    yc = y - u
    var = jnp.mean(yc * yc, axis=0, keepdims=True)
    yn = (yc * jax.lax.rsqrt(var + EPS)).astype(jnp.bfloat16)

    hff = jnp.dot(w4_ref[...], yn, preferred_element_type=jnp.float32) + b4_ref[...]
    f = hff[:half] * hff[half:]               # SimpleGate

    xb = jnp.dot(w5_ref[...], f.astype(jnp.bfloat16),
                 preferred_element_type=jnp.float32) + b5
    out_ref[0] = (y + xb).astype(out_ref.dtype)   # residual 2 (gamma folded)


# ---------------------------------------------------------------------------
# Wrapper
# ---------------------------------------------------------------------------
def _pick_rows_per_block(H, W, target_lanes=2048):
    """Largest divisor of H with rows*W <= target_lanes (and lane-tileable)."""
    best = H
    limit = max(2, target_lanes // W)
    for d in range(2, H + 1):
        if H % d == 0 and d <= limit:
            best = d
    if best != H and (best * W) % 128 != 0:
        best = H                              # fall back to whole image
    return best


def block_forward(x_nchw, kp, rows_per_block=None):
    """x_nchw: (N, C, H, W). kp: dict from prepare_kernel_params()."""
    N, C, H, W = x_nchw.shape
    HW = H * W
    Rb = rows_per_block if rows_per_block is not None else _pick_rows_per_block(H, W)
    assert H % Rb == 0, "rows_per_block must divide H"
    L = Rb * W
    assert (L % 128 == 0) or (L == HW), "row block must be lane-tileable"
    R = H // Rb

    dwc = kp['w1'].shape[0]
    x4 = x_nchw.astype(jnp.float32)                   # (N, C, H, W)
    x = x4.reshape(N, C, HW)                          # channel-major, HW on lanes

    # per-block halo rows (row above / below), clamped at the image border; the
    # kernel zeroes the invalid ones after conv1.
    starts = jnp.arange(R) * Rb
    top = jnp.maximum(starts - 1, 0)
    bot = jnp.minimum(starts + Rb, H - 1)
    halo = jnp.stack([x4[:, :, top, :], x4[:, :, bot, :]], axis=2)  # (N, C, 2, R, W)
    halo = jnp.transpose(halo, (0, 3, 2, 1, 4)).reshape(N, R, 2 * C, W)

    def param_spec(p):
        zero = (0,) * p.ndim
        return pl.BlockSpec(p.shape, lambda n, r, _z=zero: _z)

    x_spec = pl.BlockSpec((1, C, L), lambda n, r: (n, 0, r))
    g_spec = pl.BlockSpec((1, dwc // 2, L), lambda n, r: (n, 0, r))
    pool_spec = pl.BlockSpec((1, dwc // 2, 1), lambda n, r: (n, 0, 0))
    halo_spec = pl.BlockSpec((1, 1, 2 * C, W), lambda n, r: (n, r, 0, 0))

    vmem_limit = 48 * 1024 * 1024            # below v7x's 64 MiB physical VMEM

    # ---- pass 1: stage A + SCA pool accumulation (row axis is a reduction) ----
    g, pooled = pl.pallas_call(
        functools.partial(stage_a_kernel, Rb=Rb, W=W, HW=HW),
        out_shape=(jax.ShapeDtypeStruct((N, dwc // 2, HW), jnp.bfloat16),
                   jax.ShapeDtypeStruct((N, dwc // 2, 1), jnp.float32)),
        grid_spec=pltpu.PrefetchScalarGridSpec(
            num_scalar_prefetch=0,
            grid=(N, R),
            in_specs=[x_spec, halo_spec,
                      param_spec(kp['w1']), param_spec(kp['taps']),
                      param_spec(kp['bias12'])],
            out_specs=[g_spec, pool_spec],
        ),
        compiler_params=pltpu.CompilerParams(
            dimension_semantics=("parallel", "arbitrary"),
            vmem_limit_bytes=vmem_limit,
        ),
    )(x, halo, kp['w1'], kp['taps'], kp['bias12'])

    # ---- pass 2: SCA/conv3/residual/norm2/FFN/residual (fully parallel grid) ----
    out = pl.pallas_call(
        stage_c_kernel,
        out_shape=jax.ShapeDtypeStruct((N, C, HW), jnp.float32),
        grid_spec=pltpu.PrefetchScalarGridSpec(
            num_scalar_prefetch=0,
            grid=(N, R),
            in_specs=[x_spec, g_spec, pool_spec,
                      param_spec(kp['wscat']), param_spec(kp['bsca']),
                      param_spec(kp['w3']), param_spec(kp['w4']),
                      param_spec(kp['b4']), param_spec(kp['w5']),
                      param_spec(kp['biasc'])],
            out_specs=x_spec,
        ),
        compiler_params=pltpu.CompilerParams(
            dimension_semantics=("parallel", "parallel"),
            vmem_limit_bytes=vmem_limit,
        ),
    )(x, g, pooled, kp['wscat'], kp['bsca'], kp['w3'], kp['w4'],
      kp['b4'], kp['w5'], kp['biasc'])
    return out.reshape(N, C, H, W)


# ---------------------------------------------------------------------------
# Parameters
# ---------------------------------------------------------------------------
def make_block_params(key, c, dw_expand=2, ffn_expand=2):
    """Module-style parameters (same shapes/semantics as the torch Block)."""
    dwc = c * dw_expand
    ffn = ffn_expand * c
    ks = jax.random.split(key, 16)

    def rnd(k, shape, scale=0.1):
        return (scale * jax.random.normal(k, shape)).astype(jnp.float32)

    # NOTE: torch initializes beta/gamma to zeros; small random values here so both
    # residual branches are actually exercised by the self-test.
    return dict(
        n1w=jnp.ones((c,), jnp.float32), n1b=jnp.zeros((c,), jnp.float32),
        w1=rnd(ks[0], (dwc, c)),   b1=rnd(ks[1], (dwc,)),
        w2=rnd(ks[2], (dwc, 3, 3)), b2=rnd(ks[3], (dwc,)),
        wsca=rnd(ks[4], (c, c)),   bsca=rnd(ks[5], (c,)),
        w3=rnd(ks[6], (c, c)),     b3=rnd(ks[7], (c,)),
        beta=rnd(ks[8], (c,)),
        n2w=jnp.ones((c,), jnp.float32), n2b=jnp.zeros((c,), jnp.float32),
        w4=rnd(ks[9], (ffn, c)),   b4=rnd(ks[10], (ffn,)),
        w5=rnd(ks[11], (c, c)),    b5=rnd(ks[12], (c,)),
        gamma=rnd(ks[13], (c,)),
    )


def prepare_kernel_params(p):
    """Fold LN affines into conv1/conv4, beta into conv3, gamma into conv5, pack the
    taps/biases, and cast MXU weights to bf16 (biases stay f32)."""
    dwc, c = p['w1'].shape
    f32, bf16 = jnp.float32, jnp.bfloat16

    w1f = p['w1'] * p['n1w'][None, :]
    b1f = p['w1'] @ p['n1b'] + p['b1']
    w4f = p['w4'] * p['n2w'][None, :]
    b4f = p['w4'] @ p['n2b'] + p['b4']
    w3b = p['beta'][:, None] * p['w3']
    b3b = p['beta'] * p['b3']
    w5g = p['gamma'][:, None] * p['w5']
    b5g = p['gamma'] * p['b5']

    return dict(
        w1=w1f.astype(bf16),                                     # (2C, C)
        taps=p['w2'].reshape(dwc, 9).astype(f32),                # (2C, 9), k = ky*3+kx
        bias12=jnp.stack([b1f, p['b2']], axis=1).astype(f32),    # (2C, 2)
        wscat=jnp.transpose(p['wsca']).astype(f32),              # (C_in, C_out)
        bsca=p['bsca'].reshape(1, c).astype(f32),
        w3=w3b.astype(f32),                                      # scaled by sca in-kernel
        w4=w4f.astype(bf16),                                     # (FFN, C) merged gate
        b4=b4f.reshape(-1, 1).astype(f32),
        w5=w5g.astype(bf16),
        biasc=jnp.stack([b3b, b5g], axis=1).astype(f32),         # (C, 2)
    )


# ---------------------------------------------------------------------------
# Pure-JAX reference (same folded params / bf16 matmul casts as the kernel)
# ---------------------------------------------------------------------------
def block_reference(x_nchw, kp):
    N, C, H, W = x_nchw.shape
    HW = H * W
    dwc = kp['w1'].shape[0]
    half = dwc // 2
    x = x_nchw.reshape(N, C, HW).astype(jnp.float32)

    w1 = kp['w1']
    b1 = kp['bias12'][:, 0:1]
    b2 = kp['bias12'][:, 1:2]
    taps = kp['taps']
    b3 = kp['biasc'][:, 0:1]
    b5 = kp['biasc'][:, 1:2]

    outs = []
    for n in range(N):
        inp = x[n]
        u = jnp.mean(inp, axis=0, keepdims=True)
        xc = inp - u
        var = jnp.mean(xc * xc, axis=0, keepdims=True)
        xn = (xc * jax.lax.rsqrt(var + EPS)).astype(jnp.bfloat16)
        t = jnp.dot(w1, xn, preferred_element_type=jnp.float32) + b1

        t3 = t.reshape(dwc, H, W)
        tp = jnp.pad(t3, ((0, 0), (1, 1), (1, 1)))
        acc = jnp.zeros_like(t3)
        for k in range(9):
            ky, kx = divmod(k, 3)
            acc = acc + tp[:, ky:ky + H, kx:kx + W] * taps[:, k][:, None, None]
        t = acc.reshape(dwc, HW) + b2

        g = t[:half] * t[half:]
        pooled = jnp.mean(g, axis=1, keepdims=True)
        sca = jnp.sum(kp['wscat'] * pooled, axis=0, keepdims=True) + kp['bsca']
        w3e = (kp['w3'] * sca).astype(jnp.bfloat16)
        t = jnp.dot(w3e, g.astype(jnp.bfloat16),
                    preferred_element_type=jnp.float32) + b3
        y = inp + t

        u2 = jnp.mean(y, axis=0, keepdims=True)
        yc = y - u2
        var2 = jnp.mean(yc * yc, axis=0, keepdims=True)
        yn = (yc * jax.lax.rsqrt(var2 + EPS)).astype(jnp.bfloat16)
        hff = jnp.dot(kp['w4'], yn, preferred_element_type=jnp.float32) + kp['b4']
        f = hff[:half] * hff[half:]
        t = jnp.dot(kp['w5'], f.astype(jnp.bfloat16),
                    preferred_element_type=jnp.float32) + b5
        outs.append(y + t)
    return jnp.stack(outs).reshape(N, C, H, W)


if __name__ == "__main__":
    key = jax.random.PRNGKey(0)
    k_x, k_p = jax.random.split(key)

    N, C, H, W = 2, 8, 16, 16
    x = jax.random.normal(k_x, (N, C, H, W), dtype=jnp.float32)
    params = make_block_params(k_p, C)
    kparams = prepare_kernel_params(params)

    # rows_per_block=8 -> 2 row blocks per image: exercises the spatial tiling,
    # the halo handling and the SCA pool accumulation paths.
    out = jax.block_until_ready(block_forward(x, kparams, rows_per_block=8))
    ref = jax.block_until_ready(block_reference(x, kparams))

    assert out.shape == (N, C, H, W)
    max_err = float(jnp.max(jnp.abs(out - ref)))
    assert jnp.allclose(out, ref, rtol=2e-3, atol=2e-3), f"max abs err {max_err}"
    print("KERNEL_OK")
</pallas_src>

<mosaic_0001>
module attributes {stable_mosaic.version = 11 : i64} {
  func.func @stage_a_kernel(%arg0: i32, %arg1: i32, %arg2: memref<1x8x128xf32, #tpu.memory_space<vmem>>, %arg3: memref<1x1x16x16xf32, #tpu.memory_space<vmem>>, %arg4: memref<16x8xbf16, #tpu.memory_space<vmem>>, %arg5: memref<16x9xf32, #tpu.memory_space<vmem>>, %arg6: memref<16x2xf32, #tpu.memory_space<vmem>>, %arg7: memref<1x8x128xbf16, #tpu.memory_space<vmem>>, %arg8: memref<1x8x1xf32, #tpu.memory_space<vmem>>) attributes {dimension_semantics = [#tpu.dimension_semantics<parallel>, #tpu.dimension_semantics<arbitrary>], iteration_bounds = array<i64: 2, 2>, scalar_prefetch = 0 : i64, scratch_operands = 0 : i64, tpu.core_type = #tpu.core_type<tc>, window_params = [{transform_indices = @transform_0, window_bounds = array<i64: 1, 8, 128>}, {transform_indices = @transform_1, window_bounds = array<i64: 1, 1, 16, 16>}, {pipeline_mode = #tpu.pipeline_mode<synchronous>, transform_indices = @transform_2, window_bounds = array<i64: 16, 8>}, {pipeline_mode = #tpu.pipeline_mode<synchronous>, transform_indices = @transform_3, window_bounds = array<i64: 16, 9>}, {pipeline_mode = #tpu.pipeline_mode<synchronous>, transform_indices = @transform_4, window_bounds = array<i64: 16, 2>}, {transform_indices = @transform_5, window_bounds = array<i64: 1, 8, 128>}, {transform_indices = @transform_6, window_bounds = array<i64: 1, 8, 1>}]} {
    %c0 = arith.constant 0 : index
    %c0_0 = arith.constant 0 : index
    %0 = vector.load %arg4[%c0, %c0_0] : memref<16x8xbf16, #tpu.memory_space<vmem>>, vector<16x8xbf16>
    %c0_1 = arith.constant 0 : index
    %c0_2 = arith.constant 0 : index
    %1 = vector.load %arg6[%c0_1, %c0_2] : memref<16x2xf32, #tpu.memory_space<vmem>>, vector<16x2xf32>
    %2 = vector.extract_strided_slice %1 {offsets = [0, 0], sizes = [16, 1], strides = [1, 1]} : vector<16x2xf32> to vector<16x1xf32>
    %3 = vector.extract_strided_slice %1 {offsets = [0, 1], sizes = [16, 1], strides = [1, 1]} : vector<16x2xf32> to vector<16x1xf32>
    %c0_3 = arith.constant 0 : index
    %c0_4 = arith.constant 0 : index
    %c0_5 = arith.constant 0 : index
    %4 = vector.load %arg2[%c0_3, %c0_4, %c0_5] : memref<1x8x128xf32, #tpu.memory_space<vmem>>, vector<1x8x128xf32>
    %5 = vector.shape_cast %4 : vector<1x8x128xf32> to vector<8x128xf32>
    %cst = arith.constant dense<0.000000e+00> : vector<128xf32>
    %6 = vector.multi_reduction <add>, %5, %cst [0] : vector<8x128xf32> to vector<128xf32>
    %7 = vector.shape_cast %6 : vector<128xf32> to vector<1x128xf32>
    %cst_6 = arith.constant 8.000000e+00 : f32
    %8 = vector.broadcast %cst_6 : f32 to vector<1x128xf32>
    %9 = arith.divf %7, %8 : vector<1x128xf32>
    %10 = vector.broadcast %9 : vector<1x128xf32> to vector<8x128xf32>
    %11 = arith.subf %5, %10 : vector<8x128xf32>
    %12 = arith.mulf %11, %11 : vector<8x128xf32>
    %cst_7 = arith.constant dense<0.000000e+00> : vector<128xf32>
    %13 = vector.multi_reduction <add>, %12, %cst_7 [0] : vector<8x128xf32> to vector<128xf32>
    %14 = vector.shape_cast %13 : vector<128xf32> to vector<1x128xf32>
    %cst_8 = arith.constant 8.000000e+00 : f32
    %15 = vector.broadcast %cst_8 : f32 to vector<1x128xf32>
    %16 = arith.divf %14, %15 : vector<1x128xf32>
    %cst_9 = arith.constant 9.99999997E-7 : f32
    %17 = vector.broadcast %cst_9 : f32 to vector<1x128xf32>
    %18 = arith.addf %16, %17 : vector<1x128xf32>
    %19 = math.rsqrt %18 : vector<1x128xf32>
    %20 = vector.broadcast %19 : vector<1x128xf32> to vector<8x128xf32>
    %21 = arith.mulf %11, %20 : vector<8x128xf32>
    %22 = arith.truncf %21 : vector<8x128xf32> to vector<8x128xbf16>
    %cst_10 = arith.constant dense<0.000000e+00> : vector<16x128xf32>
    %23 = tpu.matmul %0, %22, %cst_10 {dimension_numbers = #tpu.dot_dimension_numbers<[1], [0], [0], [1], [0, 0, 1, 1], [], []>} : vector<16x8xbf16>, vector<8x128xbf16>, vector<16x128xf32> -> vector<16x128xf32>
    %24 = vector.broadcast %2 : vector<16x1xf32> to vector<16x128xf32>
    %25 = arith.addf %23, %24 : vector<16x128xf32>
    %c0_11 = arith.constant 0 : index
    %c0_12 = arith.constant 0 : index
    %c0_13 = arith.constant 0 : index
    %c0_14 = arith.constant 0 : index
    %26 = vector.load %arg3[%c0_11, %c0_12, %c0_13, %c0_14] : memref<1x1x16x16xf32, #tpu.memory_space<vmem>>, vector<1x1x16x16xf32>
    %27 = vector.shape_cast %26 : vector<1x1x16x16xf32> to vector<16x16xf32>
    %c0_i32 = arith.constant 0 : i32
    %28 = arith.cmpi sgt, %arg1, %c0_i32 : i32
    %29 = arith.extui %28 : i1 to i32
    %30 = arith.sitofp %29 : i32 to f32
    %c1_i32 = arith.constant 1 : i32
    %31 = arith.cmpi slt, %arg1, %c1_i32 : i32
    %32 = arith.extui %31 : i1 to i32
    %33 = arith.sitofp %32 : i32 to f32
    %34 = vector.extract_strided_slice %27 {offsets = [0, 0], sizes = [8, 16], strides = [1, 1]} : vector<16x16xf32> to vector<8x16xf32>
    %cst_15 = arith.constant dense<0.000000e+00> : vector<16xf32>
    %35 = vector.multi_reduction <add>, %34, %cst_15 [0] : vector<8x16xf32> to vector<16xf32>
    %36 = vector.shape_cast %35 : vector<16xf32> to vector<1x16xf32>
    %cst_16 = arith.constant 8.000000e+00 : f32
    %37 = vector.broadcast %cst_16 : f32 to vector<1x16xf32>
    %38 = arith.divf %36, %37 : vector<1x16xf32>
    %39 = vector.broadcast %38 : vector<1x16xf32> to vector<8x16xf32>
    %40 = arith.subf %34, %39 : vector<8x16xf32>
    %41 = arith.mulf %40, %40 : vector<8x16xf32>
    %cst_17 = arith.constant dense<0.000000e+00> : vector<16xf32>
    %42 = vector.multi_reduction <add>, %41, %cst_17 [0] : vector<8x16xf32> to vector<16xf32>
    %43 = vector.shape_cast %42 : vector<16xf32> to vector<1x16xf32>
    %cst_18 = arith.constant 8.000000e+00 : f32
    %44 = vector.broadcast %cst_18 : f32 to vector<1x16xf32>
    %45 = arith.divf %43, %44 : vector<1x16xf32>
    %cst_19 = arith.constant 9.99999997E-7 : f32
    %46 = vector.broadcast %cst_19 : f32 to vector<1x16xf32>
    %47 = arith.addf %45, %46 : vector<1x16xf32>
    %48 = math.rsqrt %47 : vector<1x16xf32>
    %49 = vector.broadcast %48 : vector<1x16xf32> to vector<8x16xf32>
    %50 = arith.mulf %40, %49 : vector<8x16xf32>
    %51 = arith.truncf %50 : vector<8x16xf32> to vector<8x16xbf16>
    %cst_20 = arith.constant dense<0.000000e+00> : vector<16x16xf32>
    %52 = tpu.matmul %0, %51, %cst_20 {dimension_numbers = #tpu.dot_dimension_numbers<[1], [0], [0], [1], [0, 0, 1, 1], [], []>} : vector<16x8xbf16>, vector<8x16xbf16>, vector<16x16xf32> -> vector<16x16xf32>
    %53 = vector.broadcast %2 : vector<16x1xf32> to vector<16x16xf32>
    %54 = arith.addf %52, %53 : vector<16x16xf32>
    %55 = vector.broadcast %30 : f32 to vector<16x16xf32>
    %56 = arith.mulf %54, %55 : vector<16x16xf32>
    %57 = vector.extract_strided_slice %27 {offsets = [8, 0], sizes = [8, 16], strides = [1, 1]} : vector<16x16xf32> to vector<8x16xf32>
    %cst_21 = arith.constant dense<0.000000e+00> : vector<16xf32>
    %58 = vector.multi_reduction <add>, %57, %cst_21 [0] : vector<8x16xf32> to vector<16xf32>
    %59 = vector.shape_cast %58 : vector<16xf32> to vector<1x16xf32>
    %cst_22 = arith.constant 8.000000e+00 : f32
    %60 = vector.broadcast %cst_22 : f32 to vector<1x16xf32>
    %61 = arith.divf %59, %60 : vector<1x16xf32>
    %62 = vector.broadcast %61 : vector<1x16xf32> to vector<8x16xf32>
    %63 = arith.subf %57, %62 : vector<8x16xf32>
    %64 = arith.mulf %63, %63 : vector<8x16xf32>
    %cst_23 = arith.constant dense<0.000000e+00> : vector<16xf32>
    %65 = vector.multi_reduction <add>, %64, %cst_23 [0] : vector<8x16xf32> to vector<16xf32>
    %66 = vector.shape_cast %65 : vector<16xf32> to vector<1x16xf32>
    %cst_24 = arith.constant 8.000000e+00 : f32
    %67 = vector.broadcast %cst_24 : f32 to vector<1x16xf32>
    %68 = arith.divf %66, %67 : vector<1x16xf32>
    %cst_25 = arith.constant 9.99999997E-7 : f32
    %69 = vector.broadcast %cst_25 : f32 to vector<1x16xf32>
    %70 = arith.addf %68, %69 : vector<1x16xf32>
    %71 = math.rsqrt %70 : vector<1x16xf32>
    %72 = vector.broadcast %71 : vector<1x16xf32> to vector<8x16xf32>
    %73 = arith.mulf %63, %72 : vector<8x16xf32>
    %74 = arith.truncf %73 : vector<8x16xf32> to vector<8x16xbf16>
    %cst_26 = arith.constant dense<0.000000e+00> : vector<16x16xf32>
    %75 = tpu.matmul %0, %74, %cst_26 {dimension_numbers = #tpu.dot_dimension_numbers<[1], [0], [0], [1], [0, 0, 1, 1], [], []>} : vector<16x8xbf16>, vector<8x16xbf16>, vector<16x16xf32> -> vector<16x16xf32>
    %76 = vector.broadcast %2 : vector<16x1xf32> to vector<16x16xf32>
    %77 = arith.addf %75, %76 : vector<16x16xf32>
    %78 = vector.broadcast %33 : f32 to vector<16x16xf32>
    %79 = arith.mulf %77, %78 : vector<16x16xf32>
    %80 = tpu.iota {dimensions = array<i32: 1>} : vector<1x128xi32>
    %c16_i32 = arith.constant 16 : i32
    %c0_i32_27 = arith.constant 0 : i32
    %81 = arith.cmpi eq, %c16_i32, %c0_i32_27 : i32
    %c1_i32_28 = arith.constant 1 : i32
    %82 = arith.select %81, %c1_i32_28, %c16_i32 : i32
    %83 = vector.broadcast %82 : i32 to vector<1x128xi32>
    %84 = arith.remsi %80, %83 : vector<1x128xi32>
    %c0_i32_29 = arith.constant 0 : i32
    %85 = vector.broadcast %c0_i32_29 : i32 to vector<1x128xi32>
    %86 = arith.cmpi ne, %84, %85 : vector<1x128xi32>
    %c0_i32_30 = arith.constant 0 : i32
    %87 = vector.broadcast %c0_i32_30 : i32 to vector<1x128xi32>
    %88 = arith.cmpi slt, %84, %87 : vector<1x128xi32>
    %c0_i32_31 = arith.constant 0 : i32
    %89 = arith.cmpi slt, %82, %c0_i32_31 : i32
    %90 = vector.broadcast %89 : i1 to vector<1x128xi1>
    %91 = vector.broadcast %90 : vector<1x128xi1> to vector<1x128xi1>
    %92 = arith.xori %88, %91 : vector<1x128xi1>
    %93 = arith.andi %92, %86 : vector<1x128xi1>
    %94 = vector.broadcast %82 : i32 to vector<1x128xi32>
    %95 = arith.addi %84, %94 : vector<1x128xi32>
    %96 = arith.select %93, %95, %84 : vector<1x128xi1>, vector<1x128xi32>
    %c0_i32_32 = arith.constant 0 : i32
    %97 = vector.broadcast %c0_i32_32 : i32 to vector<1x128xi32>
    %98 = arith.cmpi ne, %96, %97 : vector<1x128xi32>
    %c15_i32 = arith.constant 15 : i32
    %99 = vector.broadcast %c15_i32 : i32 to vector<1x128xi32>
    %100 = arith.cmpi ne, %96, %99 : vector<1x128xi32>
    %c0_33 = arith.constant 0 : index
    %c0_34 = arith.constant 0 : index
    %101 = vector.load %arg5[%c0_33, %c0_34] : memref<16x9xf32, #tpu.memory_space<vmem>>, vector<16x9xf32>
    %102 = vector.extract_strided_slice %25 {offsets = [0, 0], sizes = [16, 112], strides = [1, 1]} : vector<16x128xf32> to vector<16x112xf32>
    %103 = tpu.concatenate %56, %102 in 1 : vector<16x16xf32>, vector<16x112xf32> -> vector<16x128xf32>
    %104 = vector.extract_strided_slice %25 {offsets = [0, 16], sizes = [16, 112], strides = [1, 1]} : vector<16x128xf32> to vector<16x112xf32>
    %105 = tpu.concatenate %104, %79 in 1 : vector<16x112xf32>, vector<16x16xf32> -> vector<16x128xf32>
    %106 = vector.extract_strided_slice %101 {offsets = [0, 4], sizes = [16, 1], strides = [1, 1]} : vector<16x9xf32> to vector<16x1xf32>
    %107 = vector.broadcast %106 : vector<16x1xf32> to vector<16x128xf32>
    %108 = arith.mulf %25, %107 : vector<16x128xf32>
    %cst_35 = arith.constant 0.000000e+00 : f32
    %109 = vector.shape_cast %100 : vector<1x128xi1> to vector<1x128xi1>
    %110 = vector.broadcast %109 : vector<1x128xi1> to vector<16x128xi1>
    %111 = vector.broadcast %cst_35 : f32 to vector<16x128xf32>
    %112 = arith.select %110, %25, %111 : vector<16x128xi1>, vector<16x128xf32>
    %c1_i32_36 = arith.constant 1 : i32
    %113 = tpu.dynamic_rotate %112 by %c1_i32_36 dim 1 : vector<16x128xf32>, i32 -> vector<16x128xf32>
    %114 = vector.extract_strided_slice %101 {offsets = [0, 3], sizes = [16, 1], strides = [1, 1]} : vector<16x9xf32> to vector<16x1xf32>
    %115 = vector.broadcast %114 : vector<16x1xf32> to vector<16x128xf32>
    %116 = arith.mulf %113, %115 : vector<16x128xf32>
    %117 = arith.addf %108, %116 : vector<16x128xf32>
    %cst_37 = arith.constant 0.000000e+00 : f32
    %118 = vector.shape_cast %98 : vector<1x128xi1> to vector<1x128xi1>
    %119 = vector.broadcast %118 : vector<1x128xi1> to vector<16x128xi1>
    %120 = vector.broadcast %cst_37 : f32 to vector<16x128xf32>
    %121 = arith.select %119, %25, %120 : vector<16x128xi1>, vector<16x128xf32>
    %c127_i32 = arith.constant 127 : i32
    %122 = tpu.dynamic_rotate %121 by %c127_i32 dim 1 : vector<16x128xf32>, i32 -> vector<16x128xf32>
    %123 = vector.extract_strided_slice %101 {offsets = [0, 5], sizes = [16, 1], strides = [1, 1]} : vector<16x9xf32> to vector<16x1xf32>
    %124 = vector.broadcast %123 : vector<16x1xf32> to vector<16x128xf32>
    %125 = arith.mulf %122, %124 : vector<16x128xf32>
    %126 = arith.addf %117, %125 : vector<16x128xf32>
    %127 = vector.extract_strided_slice %101 {offsets = [0, 1], sizes = [16, 1], strides = [1, 1]} : vector<16x9xf32> to vector<16x1xf32>
    %128 = vector.broadcast %127 : vector<16x1xf32> to vector<16x128xf32>
    %129 = arith.mulf %103, %128 : vector<16x128xf32>
    %130 = arith.addf %126, %129 : vector<16x128xf32>
    %cst_38 = arith.constant 0.000000e+00 : f32
    %131 = vector.shape_cast %100 : vector<1x128xi1> to vector<1x128xi1>
    %132 = vector.broadcast %131 : vector<1x128xi1> to vector<16x128xi1>
    %133 = vector.broadcast %cst_38 : f32 to vector<16x128xf32>
    %134 = arith.select %132, %103, %133 : vector<16x128xi1>, vector<16x128xf32>
    %c1_i32_39 = arith.constant 1 : i32
    %135 = tpu.dynamic_rotate %134 by %c1_i32_39 dim 1 : vector<16x128xf32>, i32 -> vector<16x128xf32>
    %136 = vector.extract_strided_slice %101 {offsets = [0, 0], sizes = [16, 1], strides = [1, 1]} : vector<16x9xf32> to vector<16x1xf32>
    %137 = vector.broadcast %136 : vector<16x1xf32> to vector<16x128xf32>
    %138 = arith.mulf %135, %137 : vector<16x128xf32>
    %139 = arith.addf %130, %138 : vector<16x128xf32>
    %cst_40 = arith.constant 0.000000e+00 : f32
    %140 = vector.shape_cast %98 : vector<1x128xi1> to vector<1x128xi1>
    %141 = vector.broadcast %140 : vector<1x128xi1> to vector<16x128xi1>
    %142 = vector.broadcast %cst_40 : f32 to vector<16x128xf32>
    %143 = arith.select %141, %103, %142 : vector<16x128xi1>, vector<16x128xf32>
    %c127_i32_41 = arith.constant 127 : i32
    %144 = tpu.dynamic_rotate %143 by %c127_i32_41 dim 1 : vector<16x128xf32>, i32 -> vector<16x128xf32>
    %145 = vector.extract_strided_slice %101 {offsets = [0, 2], sizes = [16, 1], strides = [1, 1]} : vector<16x9xf32> to vector<16x1xf32>
    %146 = vector.broadcast %145 : vector<16x1xf32> to vector<16x128xf32>
    %147 = arith.mulf %144, %146 : vector<16x128xf32>
    %148 = arith.addf %139, %147 : vector<16x128xf32>
    %149 = vector.extract_strided_slice %101 {offsets = [0, 7], sizes = [16, 1], strides = [1, 1]} : vector<16x9xf32> to vector<16x1xf32>
    %150 = vector.broadcast %149 : vector<16x1xf32> to vector<16x128xf32>
    %151 = arith.mulf %105, %150 : vector<16x128xf32>
    %152 = arith.addf %148, %151 : vector<16x128xf32>
    %cst_42 = arith.constant 0.000000e+00 : f32
    %153 = vector.shape_cast %100 : vector<1x128xi1> to vector<1x128xi1>
    %154 = vector.broadcast %153 : vector<1x128xi1> to vector<16x128xi1>
    %155 = vector.broadcast %cst_42 : f32 to vector<16x128xf32>
    %156 = arith.select %154, %105, %155 : vector<16x128xi1>, vector<16x128xf32>
    %c1_i32_43 = arith.constant 1 : i32
    %157 = tpu.dynamic_rotate %156 by %c1_i32_43 dim 1 : vector<16x128xf32>, i32 -> vector<16x128xf32>
    %158 = vector.extract_strided_slice %101 {offsets = [0, 6], sizes = [16, 1], strides = [1, 1]} : vector<16x9xf32> to vector<16x1xf32>
    %159 = vector.broadcast %158 : vector<16x1xf32> to vector<16x128xf32>
    %160 = arith.mulf %157, %159 : vector<16x128xf32>
    %161 = arith.addf %152, %160 : vector<16x128xf32>
    %cst_44 = arith.constant 0.000000e+00 : f32
    %162 = vector.shape_cast %98 : vector<1x128xi1> to vector<1x128xi1>
    %163 = vector.broadcast %162 : vector<1x128xi1> to vector<16x128xi1>
    %164 = vector.broadcast %cst_44 : f32 to vector<16x128xf32>
    %165 = arith.select %163, %105, %164 : vector<16x128xi1>, vector<16x128xf32>
    %c127_i32_45 = arith.constant 127 : i32
    %166 = tpu.dynamic_rotate %165 by %c127_i32_45 dim 1 : vector<16x128xf32>, i32 -> vector<16x128xf32>
    %167 = vector.extract_strided_slice %101 {offsets = [0, 8], sizes = [16, 1], strides = [1, 1]} : vector<16x9xf32> to vector<16x1xf32>
    %168 = vector.broadcast %167 : vector<16x1xf32> to vector<16x128xf32>
    %169 = arith.mulf %166, %168 : vector<16x128xf32>
    %170 = arith.addf %161, %169 : vector<16x128xf32>
    %171 = vector.broadcast %3 : vector<16x1xf32> to vector<16x128xf32>
    %172 = arith.addf %170, %171 : vector<16x128xf32>
    %173 = vector.extract_strided_slice %172 {offsets = [0, 0], sizes = [8, 128], strides = [1, 1]} : vector<16x128xf32> to vector<8x128xf32>
    %174 = vector.extract_strided_slice %172 {offsets = [8, 0], sizes = [8, 128], strides = [1, 1]} : vector<16x128xf32> to vector<8x128xf32>
    %175 = arith.mulf %173, %174 : vector<8x128xf32>
    %176 = arith.truncf %175 : vector<8x128xf32> to vector<8x128xbf16>
    %c0_46 = arith.constant 0 : index
    %c0_47 = arith.constant 0 : index
    %c0_48 = arith.constant 0 : index
    %177 = vector.load %arg7[%c0_46, %c0_47, %c0_48] : memref<1x8x128xbf16, #tpu.memory_space<vmem>>, vector<1x8x128xbf16>
    %178 = vector.shape_cast %177 : vector<1x8x128xbf16> to vector<8x128xbf16>
    %179 = vector.shape_cast %176 : vector<8x128xbf16> to vector<1x8x128xbf16>
    tpu.vector_store %arg7[%c0_46, %c0_47, %c0_48], %179 {strides = array<i32>} : memref<1x8x128xbf16, #tpu.memory_space<vmem>>, vector<1x8x128xbf16>,
    %cst_49 = arith.constant dense<0.000000e+00> : vector<8xf32>
    %180 = vector.multi_reduction <add>, %175, %cst_49 [1] : vector<8x128xf32> to vector<8xf32>
    %181 = vector.shape_cast %180 : vector<8xf32> to vector<8x1xf32>
    %cst_50 = arith.constant 3.906250e-03 : f32
    %182 = vector.broadcast %cst_50 : f32 to vector<8x1xf32>
    %183 = arith.mulf %181, %182 : vector<8x1xf32>
    %c0_i32_51 = arith.constant 0 : i32
    %184 = arith.cmpi eq, %arg1, %c0_i32_51 : i32
    %185 = arith.extui %184 : i1 to i32
    %c0_i32_52 = arith.constant 0 : i32
    %186 = arith.cmpi ne, %185, %c0_i32_52 : i32
    scf.if %186 {
      %cst_59 = arith.constant 0.000000e+00 : f32
      %193 = vector.broadcast %cst_59 : f32 to vector<8x1xf32>
      %c0_60 = arith.constant 0 : index
      %c0_61 = arith.constant 0 : index
      %c0_62 = arith.constant 0 : index
      %194 = vector.load %arg8[%c0_60, %c0_61, %c0_62] : memref<1x8x1xf32, #tpu.memory_space<vmem>>, vector<1x8x1xf32>
      %195 = vector.shape_cast %194 : vector<1x8x1xf32> to vector<8x1xf32>
      %196 = vector.shape_cast %193 : vector<8x1xf32> to vector<1x8x1xf32>
      tpu.vector_store %arg8[%c0_60, %c0_61, %c0_62], %196 {strides = array<i32>} : memref<1x8x1xf32, #tpu.memory_space<vmem>>, vector<1x8x1xf32>,
    } else {
    }
    %c0_53 = arith.constant 0 : index
    %c0_54 = arith.constant 0 : index
    %c0_55 = arith.constant 0 : index
    %187 = vector.load %arg8[%c0_53, %c0_54, %c0_55] : memref<1x8x1xf32, #tpu.memory_space<vmem>>, vector<1x8x1xf32>
    %188 = vector.shape_cast %187 : vector<1x8x1xf32> to vector<8x1xf32>
    %189 = arith.addf %188, %183 : vector<8x1xf32>
    %c0_56 = arith.constant 0 : index
    %c0_57 = arith.constant 0 : index
    %c0_58 = arith.constant 0 : index
    %190 = vector.load %arg8[%c0_56, %c0_57, %c0_58] : memref<1x8x1xf32, #tpu.memory_space<vmem>>, vector<1x8x1xf32>
    %191 = vector.shape_cast %190 : vector<1x8x1xf32> to vector<8x1xf32>
    %192 = vector.shape_cast %189 : vector<8x1xf32> to vector<1x8x1xf32>
    tpu.vector_store %arg8[%c0_56, %c0_57, %c0_58], %192 {strides = array<i32>} : memref<1x8x1xf32, #tpu.memory_space<vmem>>, vector<1x8x1xf32>,
    return
  }
  func.func @transform_0(%arg0: i32, %arg1: i32) -> (i32, i32, i32) {
    %c0_i32 = arith.constant 0 : i32
    %c0_i32_0 = arith.constant 0 : i32
    return %arg0, %c0_i32, %arg1 : i32, i32, i32
  }
  func.func @transform_1(%arg0: i32, %arg1: i32) -> (i32, i32, i32, i32) {
    %c0_i32 = arith.constant 0 : i32
    %c0_i32_0 = arith.constant 0 : i32
    %c0_i32_1 = arith.constant 0 : i32
    return %arg0, %arg1, %c0_i32, %c0_i32_0 : i32, i32, i32, i32
  }
  func.func @transform_2(%arg0: i32, %arg1: i32) -> (i32, i32) {
    %c0_i32 = arith.constant 0 : i32
    %c0_i32_0 = arith.constant 0 : i32
    %c0_i32_1 = arith.constant 0 : i32
    return %c0_i32, %c0_i32_0 : i32, i32
  }
  func.func @transform_3(%arg0: i32, %arg1: i32) -> (i32, i32) {
    %c0_i32 = arith.constant 0 : i32
    %c0_i32_0 = arith.constant 0 : i32
    %c0_i32_1 = arith.constant 0 : i32
    return %c0_i32, %c0_i32_0 : i32, i32
  }
  func.func @transform_4(%arg0: i32, %arg1: i32) -> (i32, i32) {
    %c0_i32 = arith.constant 0 : i32
    %c0_i32_0 = arith.constant 0 : i32
    %c0_i32_1 = arith.constant 0 : i32
    return %c0_i32, %c0_i32_0 : i32, i32
  }
  func.func @transform_5(%arg0: i32, %arg1: i32) -> (i32, i32, i32) {
    %c0_i32 = arith.constant 0 : i32
    %c0_i32_0 = arith.constant 0 : i32
    return %arg0, %c0_i32, %arg1 : i32, i32, i32
  }
  func.func @transform_6(%arg0: i32, %arg1: i32) -> (i32, i32, i32) {
    %c0_i32 = arith.constant 0 : i32
    %c0_i32_0 = arith.constant 0 : i32
    %c0_i32_1 = arith.constant 0 : i32
    return %arg0, %c0_i32, %c0_i32_0 : i32, i32, i32
  }
}

</mosaic_0001>

<llo_original>
// kernel: tpu_custom_call.1
$region0: #{tpu_custom_call.1}
  #allocation0 [shape = 'u32[]', space=smem, size = 0x4, offset = 0x4, fixed_abs, tag = 'smem constant byte address 0x4 - core index']
  #allocation1 [shape = 'u32[144,128]{1,0:T(1,128)}', space=vmem, size = 0x12000, scoped, tag = 'internal scratch']
  %s0 = inlined_call_operand.hbm [shape: f32[2,8,256], index: 0, kind: input, shape index: {}]
  %s1 = inlined_call_operand.hbm [shape: f32[2,2,16,16], index: 1, kind: input, shape index: {}]
  %s2 = inlined_call_operand.vmem [shape: bf16[16,8], index: 2, kind: input, shape index: {}]
  %s3 = inlined_call_operand.vmem [shape: f32[16,9], index: 3, kind: input, shape index: {}]
  %s4 = inlined_call_operand.vmem [shape: f32[16,2], index: 4, kind: input, shape index: {}]
  %s5 = inlined_call_operand.hbm [shape: bf16[2,8,256], index: 5, kind: output, shape index: {0}]
  %s6 = inlined_call_operand.vmem [shape: f32[2,8,1], index: 6, kind: output, shape index: {1}]
  %7 = xla_tuple %s5, %s6
  %s8 = sld [smem:[#allocation0]]
  $region73: #{tpu_custom_call.1} parent=0
    _
  %s10 = ssub.s32 1, %s8
  %s11 = scalar_select 0, %s10, %s8
  $region1: #{tpu_custom_call.1} parent=0
    #allocation2 [shape = 'u8[8192]{0}', space=vmem, size = 0x2000, scoped, tag = 'input window, operand 0']
    #allocation3 [shape = 's32[2]{0}', space=sflag, size = 0x8, scoped, tag = 'scoped memory for tpu_custom_call.1']
    #allocation4 [shape = 's32[2]{0}', space=sflag, size = 0x8, scoped, tag = 'scoped memory for tpu_custom_call.1']
    #allocation5 [shape = 'u8[16384]{0}', space=vmem, size = 0x4000, scoped, tag = 'input window, operand 1']
    #allocation6 [shape = 's32[2]{0}', space=sflag, size = 0x8, scoped, tag = 'scoped memory for tpu_custom_call.1']
    #allocation7 [shape = 'u8[4096]{0}', space=vmem, size = 0x1000, scoped, tag = 'output window, operand 0']
    %12 = vsyncpa [#allocation3], 0
    %s13 = scalar_lea.sflag [#allocation3], 1
    %14 = vsyncpa %s13, 0
    %15 = vsyncpa [#allocation6], 0
    %s16 = scalar_lea.sflag [#allocation6], 1
    %17 = vsyncpa %s16, 0
    %18 = vsyncpa [#allocation4], 0
    %s19 = scalar_lea.sflag [#allocation4], 1
    %20 = vsyncpa %s19, 0
    loop: start=0, step=1, limit=6
    $region2: #{tpu_custom_call.1} parent=1 // loop_pre_header
      _
    $region3: #{tpu_custom_call.1} parent=1 // loop_header
      %s22 = sphi 0, %s26
      %p23 = scmp.ge.s32.totalorder %s22, 6
      %s29 = sphi 0, %s41
      %s30 = sphi 0, %s37
      %s31 = sphi 0, %s29
      %s32 = sphi 0, %s30
      %s33 = sphi 0, %s31
      %s34 = sphi 0, %s32
      %s46 = sphi 0, %s48
      %s49 = sphi 0, %s46
      %s50 = sphi 0, %s49
      %s66 = sphi 0, %s50
      %s74 = sphi 0, %s76
      %s77 = sphi 0, %s74
      %s78 = sphi 0, %s77
      %s94 = sphi 0, %s78
      %s98 = sphi 0, %s98
      %s100 = sphi 0, %s98
      %s101 = sphi 0, %s100
      %s115 = sphi 0, %s101
      %s119 = sphi 0, %s119
      %s121 = sphi 0, %s119
      %s122 = sphi 0, %s121
      %s136 = sphi 0, %s122
      %s140 = sphi 0, %s140
      %s142 = sphi 0, %s140
      %s143 = sphi 0, %s142
      %s157 = sphi 0, %s143
      %s165 = sphi 0, %s167
      %s168 = sphi 0, %s165
      %s169 = sphi 0, %s168
      %s185 = sphi 0, %s169
      %s191 = sphi 0, %s193
      %s194 = sphi 0, %s191
      %s195 = sphi 0, %s194
      %s211 = sphi 0, %s195
    $region4: #{tpu_custom_call.1} parent=1 // loop_header_branch
      %25 = sbr.rel (%p23) target = $region8
    $region5: #{tpu_custom_call.1} parent=1 // loop_body
      %s27 = ssub.s32 %s22, 1
      %s28 = ssub.s32 %s22, 2
      %s35 = sadd.s32 1, %s30
      %p36 = scmp.ge.s32.totalorder %s35, 2
      %s37 = scalar_select %p36, 0, %s35
      %s38 = sadd.s32 1, %s29
      %s39 = scalar_select %p36, %s38, %s29
      %p40 = scmp.ge.s32.totalorder %s39, 2
      %s41 = scalar_select %p40, 0, %s39
      %s42 = ssub.s32 %s29, %s41
      %s43 = ssub.s32 %s30, %s37
      %s44 = sor.u32 %s42, %s43
      %p45 = scmp.eq.s32.totalorder %s44, 0
      %s47 = sadd.s32 %s46, 1
      %s48 = scalar_select %p45, %s46, %s47
      %p51 = pneg %p45
      %p52 = scmp.eq.s32.totalorder %s22, 3
      %p53 = por %p51, %p52
      %p54 = scmp.ne.s32.totalorder %s46, %s49
      %p55 = scmp.eq.s32.totalorder %s22, 0
      %p56 = por %p54, %p55
      %p57 = scmp.ne.s32.totalorder %s46, %s49
      %p58 = scmp.eq.s32.totalorder %s27, 3
      %p59 = por %p57, %p58
      %p60 = scmp.ne.s32.totalorder %s49, %s50
      %p61 = scmp.eq.s32.totalorder %s27, 0
      %p62 = por %p60, %p61
      %p63 = scmp.ne.s32.totalorder %s49, %s50
      %p64 = scmp.eq.s32.totalorder %s28, 3
      %p65 = por %p63, %p64
      %p67 = scmp.ne.s32.totalorder %s50, %s66
      %p68 = scmp.eq.s32.totalorder %s28, 0
      %p69 = por %p67, %p68
      %s70 = ssub.s32 %s29, %s41
      %s71 = ssub.s32 %s30, %s37
      %s72 = sor.u32 %s70, %s71
      %p73 = scmp.eq.s32.totalorder %s72, 0
      %s75 = sadd.s32 %s74, 1
      %s76 = scalar_select %p73, %s74, %s75
      %p79 = pneg %p73
      %p80 = scmp.eq.s32.totalorder %s22, 3
      %p81 = por %p79, %p80
      %p82 = scmp.ne.s32.totalorder %s74, %s77
      %p83 = scmp.eq.s32.totalorder %s22, 0
      %p84 = por %p82, %p83
      %p85 = scmp.ne.s32.totalorder %s74, %s77
      %p86 = scmp.eq.s32.totalorder %s27, 3
      %p87 = por %p85, %p86
      %p88 = scmp.ne.s32.totalorder %s77, %s78
      %p89 = scmp.eq.s32.totalorder %s27, 0
      %p90 = por %p88, %p89
      %p91 = scmp.ne.s32.totalorder %s77, %s78
      %p92 = scmp.eq.s32.totalorder %s28, 3
      %p93 = por %p91, %p92
      %p95 = scmp.ne.s32.totalorder %s78, %s94
      %p96 = scmp.eq.s32.totalorder %s28, 0
      %p97 = por %p95, %p96
      %s99 = sadd.s32 %s98, 1
      %p102 = scmp.eq.s32.totalorder %s22, 3
      %p103 = scmp.ne.s32.totalorder %s98, %s100
      %p104 = scmp.eq.s32.totalorder %s22, 0
      %p105 = por %p103, %p104
      %p106 = scmp.ne.s32.totalorder %s98, %s100
      %p107 = scmp.eq.s32.totalorder %s27, 3
      %p108 = por %p106, %p107
      %p109 = scmp.ne.s32.totalorder %s100, %s101
      %p110 = scmp.eq.s32.totalorder %s27, 0
      %p111 = por %p109, %p110
      %p112 = scmp.ne.s32.totalorder %s100, %s101
      %p113 = scmp.eq.s32.totalorder %s28, 3
      %p114 = por %p112, %p113
      %p116 = scmp.ne.s32.totalorder %s101, %s115
      %p117 = scmp.eq.s32.totalorder %s28, 0
      %p118 = por %p116, %p117
      %s120 = sadd.s32 %s119, 1
      %p123 = scmp.eq.s32.totalorder %s22, 3
      %p124 = scmp.ne.s32.totalorder %s119, %s121
      %p125 = scmp.eq.s32.totalorder %s22, 0
      %p126 = por %p124, %p125
      %p127 = scmp.ne.s32.totalorder %s119, %s121
      %p128 = scmp.eq.s32.totalorder %s27, 3
      %p129 = por %p127, %p128
      %p130 = scmp.ne.s32.totalorder %s121, %s122
      %p131 = scmp.eq.s32.totalorder %s27, 0
      %p132 = por %p130, %p131
      %p133 = scmp.ne.s32.totalorder %s121, %s122
      %p134 = scmp.eq.s32.totalorder %s28, 3
      %p135 = por %p133, %p134
      %p137 = scmp.ne.s32.totalorder %s122, %s136
      %p138 = scmp.eq.s32.totalorder %s28, 0
      %p139 = por %p137, %p138
      %s141 = sadd.s32 %s140, 1
      %p144 = scmp.eq.s32.totalorder %s22, 3
      %p145 = scmp.ne.s32.totalorder %s140, %s142
      %p146 = scmp.eq.s32.totalorder %s22, 0
      %p147 = por %p145, %p146
      %p148 = scmp.ne.s32.totalorder %s140, %s142
      %p149 = scmp.eq.s32.totalorder %s27, 3
      %p150 = por %p148, %p149
      %p151 = scmp.ne.s32.totalorder %s142, %s143
      %p152 = scmp.eq.s32.totalorder %s27, 0
      %p153 = por %p151, %p152
      %p154 = scmp.ne.s32.totalorder %s142, %s143
      %p155 = scmp.eq.s32.totalorder %s28, 3
      %p156 = por %p154, %p155
      %p158 = scmp.ne.s32.totalorder %s143, %s157
      %p159 = scmp.eq.s32.totalorder %s28, 0
      %p160 = por %p158, %p159
      %s161 = ssub.s32 %s29, %s41
      %s162 = ssub.s32 %s30, %s37
      %s163 = sor.u32 %s161, %s162
      %p164 = scmp.eq.s32.totalorder %s163, 0
      %s166 = sadd.s32 %s165, 1
      %s167 = scalar_select %p164, %s165, %s166
      %p170 = pneg %p164
      %p171 = scmp.eq.s32.totalorder %s22, 3
      %p172 = por %p170, %p171
      %p173 = scmp.ne.s32.totalorder %s165, %s168
      %p174 = scmp.eq.s32.totalorder %s22, 0
      %p175 = por %p173, %p174
      %p176 = scmp.ne.s32.totalorder %s165, %s168
      %p177 = scmp.eq.s32.totalorder %s27, 3
      %p178 = por %p176, %p177
      %p179 = scmp.ne.s32.totalorder %s168, %s169
      %p180 = scmp.eq.s32.totalorder %s27, 0
      %p181 = por %p179, %p180
      %p182 = scmp.ne.s32.totalorder %s168, %s169
      %p183 = scmp.eq.s32.totalorder %s28, 3
      %p184 = por %p182, %p183
      %p186 = scmp.ne.s32.totalorder %s169, %s185
      %p187 = scmp.eq.s32.totalorder %s28, 0
      %p188 = por %p186, %p187
      %s189 = ssub.s32 %s29, %s41
      %p190 = scmp.eq.s32.totalorder %s189, 0
      %s192 = sadd.s32 %s191, 1
      %s193 = scalar_select %p190, %s191, %s192
      %p196 = pneg %p190
      %p197 = scmp.eq.s32.totalorder %s22, 3
      %p198 = por %p196, %p197
      %p199 = scmp.ne.s32.totalorder %s191, %s194
      %p200 = scmp.eq.s32.totalorder %s22, 0
      %p201 = por %p199, %p200
      %p202 = scmp.ne.s32.totalorder %s191, %s194
      %p203 = scmp.eq.s32.totalorder %s27, 3
      %p204 = por %p202, %p203
      %p205 = scmp.ne.s32.totalorder %s194, %s195
      %p206 = scmp.eq.s32.totalorder %s27, 0
      %p207 = por %p205, %p206
      %p208 = scmp.ne.s32.totalorder %s194, %s195
      %p209 = scmp.eq.s32.totalorder %s28, 3
      %p210 = por %p208, %p209
      %p212 = scmp.ne.s32.totalorder %s195, %s211
      %p213 = scmp.eq.s32.totalorder %s28, 0
      %p214 = por %p212, %p213
      %p215 = scmp.le.s32.totalorder 1, %s22
      %p216 = scmp.lt.s32.totalorder %s22, 5
      %p217 = pnand %p215, %p216
      %p218 = pneg %p217
      // Predicated region
      $region9: #{tpu_custom_call.1} parent=5 // pred_check
        _
      $region10: #{tpu_custom_call.1} parent=5 // pred_check_branch
        %220 = sbr.rel (%p217) target = $region12
      $region11: #{tpu_custom_call.1} parent=5 // pred_region
        %s221 = ssub.s32 %s22, 1
        // Predicated region
        $region13: #{tpu_custom_call.1} parent=11 // pred_check
          %p222 = pneg %p111
        $region14: #{tpu_custom_call.1} parent=11 // pred_check_branch
          %224 = sbr.rel (%p222) target = $region16
        $region15: #{tpu_custom_call.1} parent=11 // pred_region
          _
        $region16: #{tpu_custom_call.1} parent=11 // pred_fallthru
          _
        // Predicated region
        $region17: #{tpu_custom_call.1} parent=11 // pred_check
          %p225 = pneg %p132
        $region18: #{tpu_custom_call.1} parent=11 // pred_check_branch
          %227 = sbr.rel (%p225) target = $region20
        $region19: #{tpu_custom_call.1} parent=11 // pred_region
          _
        $region20: #{tpu_custom_call.1} parent=11 // pred_fallthru
          _
        // Predicated region
        $region21: #{tpu_custom_call.1} parent=11 // pred_check
          %p228 = pneg %p153
        $region22: #{tpu_custom_call.1} parent=11 // pred_check_branch
          %230 = sbr.rel (%p228) target = $region24
        $region23: #{tpu_custom_call.1} parent=11 // pred_region
          _
        $region24: #{tpu_custom_call.1} parent=11 // pred_fallthru
          _
      $region12: #{tpu_custom_call.1} parent=5 // pred_fallthru
        _
      %p231 = scmp.lt.s32.totalorder %s22, 4
      // Predicated region
      $region25: #{tpu_custom_call.1} parent=5 // pred_check
        %p232 = pneg %p231
      $region26: #{tpu_custom_call.1} parent=5 // pred_check_branch
        %234 = sbr.rel (%p232) target = $region28
      $region27: #{tpu_custom_call.1} parent=5 // pred_region
        // Predicated region
        $region29: #{tpu_custom_call.1} parent=27 // pred_check
          %p235 = pneg %p56
        $region30: #{tpu_custom_call.1} parent=27 // pred_check_branch
          %237 = sbr.rel (%p235) target = $region32
        $region31: #{tpu_custom_call.1} parent=27 // pred_region
          %s238 = sand.u32 %s46, 1
          %s239 = scalar_lea.sflag [#allocation3], %s238
          %s240 = sand.u32 %s46, 1
          %s241 = smul.addr %s240, 8
          %s242 = scalar_lea.vmem [#allocation2], %s241
          %s244 = ssub.s32 128, 128
          %245 = vsyncadd %s239, %s244
          %s246 = smul.addr %s29, 2
          %s247 = sadd.s32 %s30, %s246
          %s248 = smul.addr %s247, 128
          %s249 = scalar_lea.hbm %s0, %s248
          %s251 = sshll.u32 %s242, 4
          %s252 = int_to_ptr.vmem [resolvable:$true] %s251
          %254 = dma.hbm_to_vmem [thread:$0]  %s249, 128, %s252, %s239
        $region32: #{tpu_custom_call.1} parent=27 // pred_fallthru
          _
        // Predicated region
        $region33: #{tpu_custom_call.1} parent=27 // pred_check
          %p255 = pneg %p84
        $region34: #{tpu_custom_call.1} parent=27 // pred_check_branch
          %257 = sbr.rel (%p255) target = $region36
        $region35: #{tpu_custom_call.1} parent=27 // pred_region
          %s258 = sand.u32 %s74, 1
          %s259 = scalar_lea.sflag [#allocation6], %s258
          %s260 = sand.u32 %s74, 1
          %s261 = smul.addr %s260, 16
          %s262 = scalar_lea.vmem [#allocation5], %s261
          %s264 = ssub.s32 256, 256
          %265 = vsyncadd %s259, %s264
          %s266 = smul.addr %s30, 2
          %s267 = smul.addr %s29, 4
          %s268 = sadd.s32 %s266, %s267
          %s269 = smul.addr %s268, 128
          %s270 = scalar_lea.hbm %s1, %s269
          %s271 = sshll.u32 %s262, 4
          %s272 = int_to_ptr.vmem [resolvable:$true] %s271
          %277 = dma.hbm_to_vmem [thread:$0]  %s270, 256, %s272, %s259, 128, 128, 8
        $region36: #{tpu_custom_call.1} parent=27 // pred_fallthru
          _
      $region28: #{tpu_custom_call.1} parent=5 // pred_fallthru
        _
      %p278 = scmp.le.s32.totalorder 1, %s22
      %p279 = scmp.lt.s32.totalorder %s22, 5
      %p280 = pnand %p278, %p279
      %p281 = pneg %p280
      // Predicated region
      $region37: #{tpu_custom_call.1} parent=5 // pred_check
        _
      $region38: #{tpu_custom_call.1} parent=5 // pred_check_branch
        %283 = sbr.rel (%p280) target = $region40
      $region39: #{tpu_custom_call.1} parent=5 // pred_region
        %s284 = ssub.s32 %s22, 1
        %s285 = sand.u32 %s49, 1
        %s286 = scalar_lea.sflag [#allocation3], %s285
        %s287 = sand.u32 %s49, 1
        %s288 = smul.addr %s287, 8
        %s289 = scalar_lea.vmem [#allocation2], %s288
        // Predicated region
        $region41: #{tpu_custom_call.1} parent=39 // pred_check
          %p290 = pneg %p62
        $region42: #{tpu_custom_call.1} parent=39 // pred_check_branch
          %292 = sbr.rel (%p290) target = $region44
        $region43: #{tpu_custom_call.1} parent=39 // pred_region
          %293 = dma.done %s286, 128
        $region44: #{tpu_custom_call.1} parent=39 // pred_fallthru
          _
        %s294 = sand.u32 %s77, 1
        %s295 = scalar_lea.sflag [#allocation6], %s294
        %s296 = sand.u32 %s77, 1
        %s297 = smul.addr %s296, 16
        %s298 = scalar_lea.vmem [#allocation5], %s297
        // Predicated region
        $region45: #{tpu_custom_call.1} parent=39 // pred_check
          %p299 = pneg %p90
        $region46: #{tpu_custom_call.1} parent=39 // pred_check_branch
          %301 = sbr.rel (%p299) target = $region48
        $region47: #{tpu_custom_call.1} parent=39 // pred_region
          %302 = dma.done %s295, 256
        $region48: #{tpu_custom_call.1} parent=39 // pred_fallthru
          _
        %s303 = sand.u32 %s49, 1
        %s304 = scalar_lea.sflag [#allocation3], %s303
        %s305 = sand.u32 %s49, 1
        %s306 = smul.addr %s305, 8
        %s307 = scalar_lea.vmem [#allocation2], %s306
        %p308 = pneg %p62
        %p309 = pneg %p59
        %s310 = sand.u32 %s77, 1
        %s311 = scalar_lea.sflag [#allocation6], %s310
        %s312 = sand.u32 %s77, 1
        %s313 = smul.addr %s312, 16
        %s314 = scalar_lea.vmem [#allocation5], %s313
        %p315 = pneg %p90
        %p316 = pneg %p87
        %p317 = pneg %p111
        %p318 = pneg %p108
        %p319 = pneg %p132
        %p320 = pneg %p129
        %p321 = pneg %p153
        %p322 = pneg %p150
        %p323 = pneg %p181
        %p324 = pneg %p178
        %s325 = sand.u32 %s168, 1
        %s326 = scalar_lea.sflag [#allocation4], %s325
        %s327 = sand.u32 %s168, 1
        %s328 = smul.addr %s327, 4
        %s329 = scalar_lea.vmem [#allocation7], %s328
        %p330 = pneg %p207
        %p331 = pneg %p204
        %p332 = scmp.lt.s32.totalorder %s31, 1
        %s333 = scalar_select %p332, %s31, 1
        %s334 = smul.addr %s333, 8
        %s335 = scalar_lea.vmem %s6, %s334
        %p336 = scmp.lt.s32.totalorder %s31, 1
        %s337 = scalar_select %p336, %s31, 1
        %s338 = smul.addr %s337, 8
        %s339 = scalar_lea.vmem %s6, %s338
        %v341 = vld [vmem:[%s2] sm:$0xf]
        %v342 = vld [vmem:[%s2 + $0x4] sm:$0xf]
        %v343 = vld [vmem:[%s4] sm:$0xff]
        %v344 = vld [vmem:[%s4 + $0x8] sm:$0xff]
        %v345 = vld [vmem:[%s289] sm:$0xff]
        %v346 = vrot.slane %v345, 4
        %v347 = vadd.f32 %v345, %v346
        %v348 = vrot.slane %v347, 2
        %v349 = vadd.f32 %v347, %v348
        %v350 = vrot.slane %v349, 1
        %v351 = vadd.f32 %v349, %v350
        %v352 = vrcp.pop 8.0
        %v353 = vmul.f32 %v351, %v352
        %v354 = vsub.f32 %v345, %v353
        %v355 = vmul.f32 %v354, %v354
        %v356 = vrot.slane %v355, 4
        %v357 = vadd.f32 %v355, %v356
        %v358 = vrot.slane %v357, 2
        %v359 = vadd.f32 %v357, %v358
        %v360 = vrot.slane %v359, 1
        %v361 = vadd.f32 %v359, %v360
        %v362 = vmul.f32 %v361, %v352
        %v363 = vadd.f32 %v362, 1e-06
        %v364 = vrsqrt.pop %v363
        %v365 = vmul.f32 %v354, %v364
        %v366 = vpack.c.bf16 %v365, %v365
        %368 = vset.pattern.permute.xlu0 0
        %369 = vperm.xlu0 %368, %v343
        %v370 = vpop.permute.xlu0 %369
        %373 = vset.pattern.permute.xlu0 0
        %374 = vperm.xlu0 %373, %v344
        %v375 = vpop.permute.xlu0 %374
        %v379 = vunpack.c.l.b16 %v341
        %v380 = vunpack.c.l.b16 %v342
        %v381 = vpack.c.b16 %v380, %v379
        %vm382 = vcmask 64512
        %v384 = vsel %vm382, %v381, 0
        %vm386 = vcmask 1043456
        %v388 = vsel %vm386, %v366, 0
        %390 = vmatprep.subr.bf16.mxu0 0
        %391 = vmatpush1.bf16.msra.mxu0 %v388
        %392 = vmatprep.subr.bf16.mxu0 0
        %393 = vmatpush1.bf16.msra.mxu0 0
        %394 = vmatprep.subr.bf16.mxu0 0
        %395 = vmatpush1.bf16.msra.mxu0 0
        %396 = vmatprep.subr.bf16.mxu0 0
        %397 = vmatpush1.bf16.msra.mxu0 0
        %398 = vmatprep.subr.bf16.mxu0 0
        %399 = vmatpush1.bf16.msra.mxu0 0
        %400 = vmatprep.subr.bf16.mxu0 0
        %401 = vmatpush1.bf16.msra.mxu0 0
        %402 = vmatprep.subr.bf16.mxu0 0
        %403 = vmatpush1.bf16.msra.mxu0 0
        %404 = vmatprep.subr.bf16.mxu0 0
        %405 = vmatpush1.bf16.msra.mxu0 0
        %406 = vmatprep.subr.bf16.mxu0 0
        %407 = vmatpush1.bf16.msra.mxu0 0
        %408 = vmatprep.subr.bf16.mxu0 0
        %409 = vmatpush1.bf16.msra.mxu0 0
        %410 = vmatprep.subr.bf16.mxu0 0
        %411 = vmatpush1.bf16.msra.mxu0 0
        %412 = vmatprep.subr.bf16.mxu0 0
        %413 = vmatpush1.bf16.msra.mxu0 0
        %414 = vmatprep.subr.bf16.mxu0 0
        %415 = vmatpush1.bf16.msra.mxu0 0
        %416 = vmatprep.subr.bf16.mxu0 0
        %417 = vmatpush1.bf16.msra.mxu0 0
        %418 = vmatprep.subr.bf16.mxu0 0
        %419 = vmatpush1.bf16.msra.mxu0 0
        %420 = vmatprep.subr.bf16.mxu0 0
        %421 = vmatpush1.bf16.msra.mxu0 0
        %422 = vmatprep.mubr.bf16.mxu0 0
        %423 = vmatmul.mubr.bf16.gmra.mrb[0].mxu0 %v384
        %v424 = vpop.f32.mrb[0].mxu0
        %v425 = vadd.f32 %v370, %v424
        %v426 = vpop.f32.mrb[0].mxu0
        %v427 = vpop.f32.mrb[0].mxu0
        %v428 = vadd.f32 %v375, %v427
        %v429 = vpop.f32.mrb[0].mxu0
        %430 = vdwg.mxu0
        %v431 = vld [vmem:[%s298] sm:$0xff]
        %v432 = vld [vmem:[%s298 + $0x8] sm:$0xff]
        %p433 = scmp.gt.s32.totalorder %s32, 0
        %s434 = scalar_select %p433, 1, 0
        %s435 = scvt.s32.f32 %s434
        %p436 = scmp.lt.s32.totalorder %s32, 1
        %s437 = scalar_select %p436, 1, 0
        %s438 = scvt.s32.f32 %s437
        %vm439 = vcmask 130048
        %v440 = vsel %vm439, %v431, 0.0
        %v441 = vrot.slane %v440, 4
        %v442 = vadd.f32 %v440, %v441
        %v443 = vrot.slane %v442, 2
        %v444 = vadd.f32 %v442, %v443
        %v445 = vrot.slane %v444, 1
        %v446 = vadd.f32 %v444, %v445
        %v447 = vmul.f32 %v446, %v352
        %v448 = vsub.f32 %v431, %v447
        %v449 = vmul.f32 %v448, %v448
        %v450 = vsel %vm439, %v449, 0.0
        %v451 = vrot.slane %v450, 4
        %v452 = vadd.f32 %v450, %v451
        %v453 = vrot.slane %v452, 2
        %v454 = vadd.f32 %v452, %v453
        %v455 = vrot.slane %v454, 1
        %v456 = vadd.f32 %v454, %v455
        %v457 = vmul.f32 %v456, %v352
        %v458 = vadd.f32 %v457, 1e-06
        %v459 = vrsqrt.pop %v458
        %v460 = vmul.f32 %v448, %v459
        %v461 = vpack.c.bf16 %v460, %v460
        %v463 = vsel %vm386, %v461, 0
        %465 = vmatprep.subr.bf16.mxu0 0
        %466 = vmatpush1.bf16.msra.mxu0 %v463
        %467 = vmatprep.subr.bf16.mxu0 0
        %468 = vmatpush1.bf16.msra.mxu0 0
        %469 = vmatprep.subr.bf16.mxu0 0
        %470 = vmatpush1.bf16.msra.mxu0 0
        %471 = vmatprep.subr.bf16.mxu0 0
        %472 = vmatpush1.bf16.msra.mxu0 0
        %473 = vmatprep.subr.bf16.mxu0 0
        %474 = vmatpush1.bf16.msra.mxu0 0
        %475 = vmatprep.subr.bf16.mxu0 0
        %476 = vmatpush1.bf16.msra.mxu0 0
        %477 = vmatprep.subr.bf16.mxu0 0
        %478 = vmatpush1.bf16.msra.mxu0 0
        %479 = vmatprep.subr.bf16.mxu0 0
        %480 = vmatpush1.bf16.msra.mxu0 0
        %481 = vmatprep.subr.bf16.mxu0 0
        %482 = vmatpush1.bf16.msra.mxu0 0
        %483 = vmatprep.subr.bf16.mxu0 0
        %484 = vmatpush1.bf16.msra.mxu0 0
        %485 = vmatprep.subr.bf16.mxu0 0
        %486 = vmatpush1.bf16.msra.mxu0 0
        %487 = vmatprep.subr.bf16.mxu0 0
        %488 = vmatpush1.bf16.msra.mxu0 0
        %489 = vmatprep.subr.bf16.mxu0 0
        %490 = vmatpush1.bf16.msra.mxu0 0
        %491 = vmatprep.subr.bf16.mxu0 0
        %492 = vmatpush1.bf16.msra.mxu0 0
        %493 = vmatprep.subr.bf16.mxu0 0
        %494 = vmatpush1.bf16.msra.mxu0 0
        %495 = vmatprep.subr.bf16.mxu0 0
        %496 = vmatpush1.bf16.msra.mxu0 0
        %497 = vmatprep.mubr.bf16.mxu0 0
        %498 = vmatmul.mubr.bf16.gmra.mrb[0].mxu0 %v384
        %v499 = vpop.f32.mrb[0].mxu0
        %v500 = vadd.f32 %v370, %v499
        %v501 = vpop.f32.mrb[0].mxu0
        %v502 = vpop.f32.mrb[0].mxu0
        %v503 = vadd.f32 %v375, %v502
        %v504 = vpop.f32.mrb[0].mxu0
        %505 = vdwg.mxu0
        %v506 = vstv %s435
        %v507 = vmul.f32 %v500, %v506
        %v508 = vmul.f32 %v503, %v506
        %v509 = vsel %vm439, %v432, 0.0
        %v510 = vrot.slane %v509, 4
        %v511 = vadd.f32 %v509, %v510
        %v512 = vrot.slane %v511, 2
        %v513 = vadd.f32 %v511, %v512
        %v514 = vrot.slane %v513, 1
        %v515 = vadd.f32 %v513, %v514
        %v516 = vmul.f32 %v515, %v352
        %v517 = vsub.f32 %v432, %v516
        %v518 = vmul.f32 %v517, %v517
        %v519 = vsel %vm439, %v518, 0.0
        %v520 = vrot.slane %v519, 4
        %v521 = vadd.f32 %v519, %v520
        %v522 = vrot.slane %v521, 2
        %v523 = vadd.f32 %v521, %v522
        %v524 = vrot.slane %v523, 1
        %v525 = vadd.f32 %v523, %v524
        %v526 = vmul.f32 %v525, %v352
        %v527 = vadd.f32 %v526, 1e-06
        %v528 = vrsqrt.pop %v527
        %v529 = vmul.f32 %v517, %v528
        %v530 = vpack.c.bf16 %v529, %v529
        %v532 = vsel %vm386, %v530, 0
        %534 = vmatprep.subr.bf16.mxu0 0
        %535 = vmatpush1.bf16.msra.mxu0 %v532
        %536 = vmatprep.subr.bf16.mxu0 0
        %537 = vmatpush1.bf16.msra.mxu0 0
        %538 = vmatprep.subr.bf16.mxu0 0
        %539 = vmatpush1.bf16.msra.mxu0 0
        %540 = vmatprep.subr.bf16.mxu0 0
        %541 = vmatpush1.bf16.msra.mxu0 0
        %542 = vmatprep.subr.bf16.mxu0 0
        %543 = vmatpush1.bf16.msra.mxu0 0
        %544 = vmatprep.subr.bf16.mxu0 0
        %545 = vmatpush1.bf16.msra.mxu0 0
        %546 = vmatprep.subr.bf16.mxu0 0
        %547 = vmatpush1.bf16.msra.mxu0 0
        %548 = vmatprep.subr.bf16.mxu0 0
        %549 = vmatpush1.bf16.msra.mxu0 0
        %550 = vmatprep.subr.bf16.mxu0 0
        %551 = vmatpush1.bf16.msra.mxu0 0
        %552 = vmatprep.subr.bf16.mxu0 0
        %553 = vmatpush1.bf16.msra.mxu0 0
        %554 = vmatprep.subr.bf16.mxu0 0
        %555 = vmatpush1.bf16.msra.mxu0 0
        %556 = vmatprep.subr.bf16.mxu0 0
        %557 = vmatpush1.bf16.msra.mxu0 0
        %558 = vmatprep.subr.bf16.mxu0 0
        %559 = vmatpush1.bf16.msra.mxu0 0
        %560 = vmatprep.subr.bf16.mxu0 0
        %561 = vmatpush1.bf16.msra.mxu0 0
        %562 = vmatprep.subr.bf16.mxu0 0
        %563 = vmatpush1.bf16.msra.mxu0 0
        %564 = vmatprep.subr.bf16.mxu0 0
        %565 = vmatpush1.bf16.msra.mxu0 0
        %566 = vmatprep.mubr.bf16.mxu0 0
        %567 = vmatmul.mubr.bf16.gmra.mrb[0].mxu0 %v384
        %v568 = vpop.f32.mrb[0].mxu0
        %v569 = vadd.f32 %v370, %v568
        %v570 = vpop.f32.mrb[0].mxu0
        %v571 = vpop.f32.mrb[0].mxu0
        %v572 = vadd.f32 %v375, %v571
        %v573 = vpop.f32.mrb[0].mxu0
        %574 = vdwg.mxu0
        %v575 = vstv %s438
        %v576 = vmul.f32 %v569, %v575
        %v577 = vmul.f32 %v572, %v575
        %v578 = vlaneseq
        %v579 = vand.u32 %v578, 127
        %vm580 = vcmp.lt.s32.totalorder %v579, 0
        %v581 = vsub.s32 0, %v579
        %v582 = vsel %vm580, %v581, %v579
        %v583 = vshrl.u32 %v582, 4
        %v584 = vand.u32 %v582, 15
        %v585 = vsub.s32 0, %v584
        %v586 = vsel %vm580, %v585, %v584
        %vm587 = vcmp.ne.s32.totalorder %v586, 0
        %vm588 = vcmp.lt.s32.totalorder %v586, 0
        %vm589 = vmand %vm588, %vm587
        %v590 = vadd.s32 %v586, 16
        %v591 = vsel %vm589, %v590, %v586
        %vm592 = vcmp.ne.s32.totalorder %v591, 0
        %vm593 = vcmp.ne.s32.totalorder %v591, 15
        %v594 = vld [vmem:[%s3] sm:$0xff]
        %v595 = vld [vmem:[%s3 + $0x8] sm:$0xff]
        %598 = vrot.lane.b32.xlu0 %v425, 16
        %v599 = vpop.permute.xlu0 %598
        %600 = vrot.lane.b32.xlu0 %v428, 16
        %v601 = vpop.permute.xlu0 %600
        %v604 = vsel %vm439, %v507, %v599
        %v605 = vsel %vm439, %v508, %v601
        %606 = vrot.lane.b32.xlu0 %v425, 112
        %v607 = vpop.permute.xlu0 %606
        %608 = vrot.lane.b32.xlu0 %v428, 112
        %v609 = vpop.permute.xlu0 %608
        %614 = vrot.lane.b32.xlu0 %v576, 112
        %v615 = vpop.permute.xlu0 %614
        %616 = vrot.lane.b32.xlu0 %v577, 112
        %v617 = vpop.permute.xlu0 %616
        %vm620 = vcmask 916480
        %v621 = vsel %vm620, %v607, %v615
        %v622 = vsel %vm620, %v609, %v617
        %624 = vset.pattern.permute.xlu0 4
        %625 = vperm.xlu0 %624, %v594
        %v626 = vpop.permute.xlu0 %625
        %629 = vset.pattern.permute.xlu0 4
        %630 = vperm.xlu0 %629, %v595
        %v631 = vpop.permute.xlu0 %630
        %v633 = vmul.f32 %v425, %v626
        %v634 = vmul.f32 %v428, %v631
        %v635 = vsel %vm593, 1, 0
        %vm636 = vcmp.eq.s32.totalorder %v635, 1
        %v637 = vsel %vm636, %v425, 0.0
        %v638 = vsel %vm636, %v428, 0.0
        %639 = vrot.lane.b32.xlu0 %v637, 1
        %v640 = vpop.permute.xlu0 %639
        %641 = vrot.lane.b32.xlu0 %v638, 1
        %v642 = vpop.permute.xlu0 %641
        %643 = vset.pattern.permute.xlu0 3
        %644 = vperm.xlu0 %643, %v594
        %v645 = vpop.permute.xlu0 %644
        %647 = vset.pattern.permute.xlu0 3
        %648 = vperm.xlu0 %647, %v595
        %v649 = vpop.permute.xlu0 %648
        %v651 = vmul.f32 %v640, %v645
        %v652 = vmul.f32 %v642, %v649
        %v653 = vadd.f32 %v633, %v651
        %v654 = vadd.f32 %v634, %v652
        %v655 = vsel %vm592, 1, 0
        %vm656 = vcmp.eq.s32.totalorder %v655, 1
        %v657 = vsel %vm656, %v425, 0.0
        %v658 = vsel %vm656, %v428, 0.0
        %659 = vrot.lane.b32.xlu0 %v657, 127
        %v660 = vpop.permute.xlu0 %659
        %661 = vrot.lane.b32.xlu0 %v658, 127
        %v662 = vpop.permute.xlu0 %661
        %663 = vset.pattern.permute.xlu0 5
        %664 = vperm.xlu0 %663, %v594
        %v665 = vpop.permute.xlu0 %664
        %667 = vset.pattern.permute.xlu0 5
        %668 = vperm.xlu0 %667, %v595
        %v669 = vpop.permute.xlu0 %668
        %v671 = vmul.f32 %v660, %v665
        %v672 = vmul.f32 %v662, %v669
        %v673 = vadd.f32 %v653, %v671
        %v674 = vadd.f32 %v654, %v672
        %675 = vset.pattern.permute.xlu0 1
        %676 = vperm.xlu0 %675, %v594
        %v677 = vpop.permute.xlu0 %676
        %679 = vset.pattern.permute.xlu0 1
        %680 = vperm.xlu0 %679, %v595
        %v681 = vpop.permute.xlu0 %680
        %v683 = vmul.f32 %v604, %v677
        %v684 = vmul.f32 %v605, %v681
        %v685 = vadd.f32 %v673, %v683
        %v686 = vadd.f32 %v674, %v684
        %v687 = vsel %vm636, %v604, 0.0
        %v688 = vsel %vm636, %v605, 0.0
        %689 = vrot.lane.b32.xlu0 %v687, 1
        %v690 = vpop.permute.xlu0 %689
        %691 = vrot.lane.b32.xlu0 %v688, 1
        %v692 = vpop.permute.xlu0 %691
        %693 = vset.pattern.permute.xlu0 0
        %694 = vperm.xlu0 %693, %v594
        %v695 = vpop.permute.xlu0 %694
        %697 = vset.pattern.permute.xlu0 0
        %698 = vperm.xlu0 %697, %v595
        %v699 = vpop.permute.xlu0 %698
        %v701 = vmul.f32 %v690, %v695
        %v702 = vmul.f32 %v692, %v699
        %v703 = vadd.f32 %v685, %v701
        %v704 = vadd.f32 %v686, %v702
        %v705 = vsel %vm656, %v604, 0.0
        %v706 = vsel %vm656, %v605, 0.0
        %707 = vrot.lane.b32.xlu0 %v705, 127
        %v708 = vpop.permute.xlu0 %707
        %709 = vrot.lane.b32.xlu0 %v706, 127
        %v710 = vpop.permute.xlu0 %709
        %711 = vset.pattern.permute.xlu0 2
        %712 = vperm.xlu0 %711, %v594
        %v713 = vpop.permute.xlu0 %712
        %715 = vset.pattern.permute.xlu0 2
        %716 = vperm.xlu0 %715, %v595
        %v717 = vpop.permute.xlu0 %716
        %v719 = vmul.f32 %v708, %v713
        %v720 = vmul.f32 %v710, %v717
        %v721 = vadd.f32 %v703, %v719
        %v722 = vadd.f32 %v704, %v720
        %723 = vset.pattern.permute.xlu0 7
        %724 = vperm.xlu0 %723, %v594
        %v725 = vpop.permute.xlu0 %724
        %727 = vset.pattern.permute.xlu0 7
        %728 = vperm.xlu0 %727, %v595
        %v729 = vpop.permute.xlu0 %728
        %v731 = vmul.f32 %v621, %v725
        %v732 = vmul.f32 %v622, %v729
        %v733 = vadd.f32 %v721, %v731
        %v734 = vadd.f32 %v722, %v732
        %v735 = vsel %vm636, %v621, 0.0
        %v736 = vsel %vm636, %v622, 0.0
        %737 = vrot.lane.b32.xlu0 %v735, 1
        %v738 = vpop.permute.xlu0 %737
        %739 = vrot.lane.b32.xlu0 %v736, 1
        %v740 = vpop.permute.xlu0 %739
        %741 = vset.pattern.permute.xlu0 6
        %742 = vperm.xlu0 %741, %v594
        %v743 = vpop.permute.xlu0 %742
        %745 = vset.pattern.permute.xlu0 6
        %746 = vperm.xlu0 %745, %v595
        %v747 = vpop.permute.xlu0 %746
        %v749 = vmul.f32 %v738, %v743
        %v750 = vmul.f32 %v740, %v747
        %v751 = vadd.f32 %v733, %v749
        %v752 = vadd.f32 %v734, %v750
        %v753 = vsel %vm656, %v621, 0.0
        %v754 = vsel %vm656, %v622, 0.0
        %755 = vrot.lane.b32.xlu0 %v753, 127
        %v756 = vpop.permute.xlu0 %755
        %757 = vrot.lane.b32.xlu0 %v754, 127
        %v758 = vpop.permute.xlu0 %757
        %759 = vset.pattern.permute.xlu0 8
        %760 = vperm.xlu0 %759, %v594
        %v761 = vpop.permute.xlu0 %760
        %763 = vset.pattern.permute.xlu0 8
        %764 = vperm.xlu0 %763, %v595
        %v765 = vpop.permute.xlu0 %764
        %v767 = vmul.f32 %v756, %v761
        %v768 = vmul.f32 %v758, %v765
        %v769 = vadd.f32 %v751, %v767
        %v770 = vadd.f32 %v752, %v768
        %771 = vset.pattern.permute.xlu0 1
        %772 = vperm.xlu0 %771, %v343
        %v773 = vpop.permute.xlu0 %772
        %775 = vset.pattern.permute.xlu0 1
        %776 = vperm.xlu0 %775, %v344
        %v777 = vpop.permute.xlu0 %776
        %v779 = vadd.f32 %v769, %v773
        %v780 = vadd.f32 %v770, %v777
        %v781 = vmul.f32 %v779, %v780
        %v782 = vpack.c.bf16 %v781, %v781
        %783 = vst [vmem:[%s329] sm:$0xf] %v782
        %784 = vadd.xlane.f32.xlu0 %v781
        %v785 = vpop.xlane.xlu0 %784
        %v786 = vmul.f32 %v785, 0.00390625
        %p787 = scmp.eq.s32.totalorder %s32, 0
        // Predicated region
        $region49: #{tpu_custom_call.1} parent=39 // pred_check
          %p788 = pneg %p787
        $region50: #{tpu_custom_call.1} parent=39 // pred_check_branch
          %790 = sbr.rel (%p788) target = $region52
        $region51: #{tpu_custom_call.1} parent=39 // pred_region
          %vm791 = vcmask 7168
          %792 = vst.msk [vmem:[%s339] sm:$0xff] %vm791, 0.0
        $region52: #{tpu_custom_call.1} parent=39 // pred_fallthru
          _
        %v793 = vld [vmem:[%s339] sm:$0xff]
        %v794 = vadd.f32 %v793, %v786
        %vm795 = vcmask 7168
        %796 = vst.msk [vmem:[%s339] sm:$0xff] %vm795, %v794
        %s797 = sand.u32 %s168, 1
        %s798 = scalar_lea.sflag [#allocation4], %s797
        %s799 = sand.u32 %s168, 1
        %s800 = smul.addr %s799, 4
        %s801 = scalar_lea.vmem [#allocation7], %s800
        %p802 = scmp.lt.s32.totalorder %s31, 1
        %s803 = scalar_select %p802, %s31, 1
        %s804 = smul.addr %s803, 8
        %s805 = scalar_lea.vmem %s6, %s804
        // Predicated region
        $region53: #{tpu_custom_call.1} parent=39 // pred_check
          %p806 = pneg %p178
        $region54: #{tpu_custom_call.1} parent=39 // pred_check_branch
          %808 = sbr.rel (%p806) target = $region56
        $region55: #{tpu_custom_call.1} parent=39 // pred_region
          %s810 = ssub.s32 64, 64
          %811 = vsyncadd %s798, %s810
          %s812 = smul.addr %s31, 2
          %s813 = sadd.s32 %s32, %s812
          %s814 = smul.addr %s813, 64
          %s815 = scalar_lea.hbm %s5, %s814
          %s817 = sshll.u32 %s801, 4
          %s818 = int_to_ptr.vmem [resolvable:$true] %s817
          %820 = dma.vmem_to_hbm [thread:$0]  %s818, 64, %s815, %s798
        $region56: #{tpu_custom_call.1} parent=39 // pred_fallthru
          _
        // Predicated region
        $region57: #{tpu_custom_call.1} parent=39 // pred_check
          %p821 = pneg %p204
        $region58: #{tpu_custom_call.1} parent=39 // pred_check_branch
          %823 = sbr.rel (%p821) target = $region60
        $region59: #{tpu_custom_call.1} parent=39 // pred_region
          _
        $region60: #{tpu_custom_call.1} parent=39 // pred_fallthru
          _
      $region40: #{tpu_custom_call.1} parent=5 // pred_fallthru
        _
      %p824 = scmp.le.s32.totalorder 2, %s22
      // Predicated region
      $region61: #{tpu_custom_call.1} parent=5 // pred_check
        %p825 = pneg %p824
      $region62: #{tpu_custom_call.1} parent=5 // pred_check_branch
        %827 = sbr.rel (%p825) target = $region64
      $region63: #{tpu_custom_call.1} parent=5 // pred_region
        %s828 = ssub.s32 %s22, 2
        // Predicated region
        $region65: #{tpu_custom_call.1} parent=63 // pred_check
          %p829 = pneg %p184
        $region66: #{tpu_custom_call.1} parent=63 // pred_check_branch
          %831 = sbr.rel (%p829) target = $region68
        $region67: #{tpu_custom_call.1} parent=63 // pred_region
          %s832 = sand.u32 %s169, 1
          %s833 = scalar_lea.sflag [#allocation4], %s832
          %s834 = sand.u32 %s169, 1
          %s835 = smul.addr %s834, 4
          %s836 = scalar_lea.vmem [#allocation7], %s835
          %837 = dma.done %s833, 64
        $region68: #{tpu_custom_call.1} parent=63 // pred_fallthru
          _
        // Predicated region
        $region69: #{tpu_custom_call.1} parent=63 // pred_check
          %p838 = pneg %p210
        $region70: #{tpu_custom_call.1} parent=63 // pred_check_branch
          %840 = sbr.rel (%p838) target = $region72
        $region71: #{tpu_custom_call.1} parent=63 // pred_region
          %p841 = scmp.lt.s32.totalorder %s33, 1
          %s842 = scalar_select %p841, %s33, 1
          %s843 = smul.addr %s842, 8
          %s844 = scalar_lea.vmem %s6, %s843
        $region72: #{tpu_custom_call.1} parent=63 // pred_fallthru
          _
      $region64: #{tpu_custom_call.1} parent=5 // pred_fallthru
        _
    $region6: #{tpu_custom_call.1} parent=1 // loop_footer
      %s26 = sadd.s32 1, %s22
    $region7: #{tpu_custom_call.1} parent=1 // loop_footer_branch
      %21 = sbr.rel target = $region3
    $region8: #{tpu_custom_call.1} parent=1 // loop_exit
      _
    %845 = vsyncpa [#allocation3], 1
    %s846 = scalar_lea.sflag [#allocation3], 1
    %847 = vsyncpa %s846, 1
    %848 = vsyncpa [#allocation6], 1
    %s849 = scalar_lea.sflag [#allocation6], 1
    %850 = vsyncpa %s849, 1
    %851 = vsyncpa [#allocation4], 1
    %s852 = scalar_lea.sflag [#allocation4], 1
    %853 = vsyncpa %s852, 1

</llo_original>
